<compile_context>
chip_gen: v7x
topology: tpu7x:2x2x1
jax: 0.10.0
libtpu: 0.0.40
codegen_flags: <defaults>
</compile_context>

<pallas_src>
import math

import jax
import jax.numpy as jnp
from jax.experimental import pallas as pl
from jax.experimental.pallas import tpu as pltpu


def _spatial_se_kernel(x_ref, wb_ref, o_ref):
    # x_ref: (1, C, TS); wb_ref: (1, C+1) = [w_0..w_{C-1}, bias]; o_ref: (1, C, TS)
    xs = x_ref[0]                                          # (C, TS), native dtype
    C = xs.shape[0]
    wb = wb_ref[...]                                       # (1, C+1), f32
    w = wb[:, :C].astype(xs.dtype)                         # (1, C)
    bias = wb[:, C:C + 1]                                  # (1, 1), f32

    # Channel reduction on the MXU: (1, C) @ (C, TS) -> (1, TS), f32 accumulate.
    z = jnp.dot(w, xs, preferred_element_type=jnp.float32) + bias
    g = jax.nn.sigmoid(z)                                  # EUP, (1, TS) f32

    # Gated multiply & store in the input dtype; gate broadcast over channels.
    o_ref[0] = xs * g.astype(xs.dtype)


def _pick_spatial_tile(C, S, itemsize, target_bytes=2 * 1024 * 1024):
    """Lane-multiple spatial tile sized so one (C, TS) block stays ~<= 2 MiB."""
    lane = 128
    s_lanes = pl.cdiv(S, lane) * lane
    ts = (target_bytes // max(C * itemsize, 1)) // lane * lane
    return max(lane, min(ts, 2048, s_lanes))


def spatial_se_layer(x, conv_weight, conv_bias, weights=None):
    """SpatialSELayer forward.

    x: (B, C, H, W); conv_weight: (1, C, 1, 1); conv_bias: (1,)
    weights (optional few-shot path): (N, C, 1, 1) -> mean over N, no bias.
    """
    B, C, H, W = x.shape
    S = H * W

    if weights is not None:
        w = jnp.mean(weights.astype(jnp.float32), axis=0).reshape(1, C)
        b = jnp.zeros((1, 1), jnp.float32)
    else:
        w = conv_weight.astype(jnp.float32).reshape(1, C)
        b = conv_bias.astype(jnp.float32).reshape(1, 1)
    wb = jnp.concatenate([w, b], axis=-1)                  # (1, C+1)

    ts = _pick_spatial_tile(C, S, x.dtype.itemsize)
    s_pad = pl.cdiv(S, ts) * ts

    xs = x.reshape(B, C, S)
    if s_pad != S:
        # Padded lanes only produce extra (discarded) gate values; the channel
        # reduction is unaffected, so no masking is needed.
        xs = jnp.pad(xs, ((0, 0), (0, 0), (0, s_pad - S)))

    out = pl.pallas_call(
        _spatial_se_kernel,
        out_shape=jax.ShapeDtypeStruct((B, C, s_pad), x.dtype),
        grid_spec=pltpu.PrefetchScalarGridSpec(
            num_scalar_prefetch=0,
            grid=(B, s_pad // ts),
            in_specs=[
                pl.BlockSpec((1, C, ts), lambda bi, si: (bi, 0, si)),
                pl.BlockSpec((1, C + 1), lambda bi, si: (0, 0)),
            ],
            out_specs=pl.BlockSpec((1, C, ts), lambda bi, si: (bi, 0, si)),
        ),
        compiler_params=pltpu.CompilerParams(
            dimension_semantics=("parallel", "parallel"),
            vmem_limit_bytes=32 * 1024 * 1024,
        ),
    )(xs, wb)

    if s_pad != S:
        out = out[:, :, :S]
    return out.reshape(B, C, H, W)


def spatial_se_ref(x, conv_weight, conv_bias, weights=None):
    """Pure-JAX reference mirroring the PyTorch forward."""
    B, C, H, W = x.shape
    if weights is not None:
        w = jnp.mean(weights.astype(jnp.float32), axis=0).reshape(C)
        bias = jnp.float32(0.0)
    else:
        w = conv_weight.astype(jnp.float32).reshape(C)
        bias = conv_bias.astype(jnp.float32).reshape(())
    z = jnp.einsum("bchw,c->bhw", x.astype(jnp.float32), w) + bias
    g = jax.nn.sigmoid(z)
    return (x.astype(jnp.float32) * g[:, None, :, :]).astype(x.dtype)


if __name__ == "__main__":
    key = jax.random.PRNGKey(0)
    kx, kw, kb = jax.random.split(key, 3)

    B, C, H, W = 2, 4, 16, 16
    x = jax.random.normal(kx, (B, C, H, W), dtype=jnp.float32)

    # PyTorch Conv2d(C, 1, kernel_size=1) init: U(-1/sqrt(fan_in), 1/sqrt(fan_in)),
    # fan_in = C * 1 * 1.
    bound = 1.0 / math.sqrt(C)
    conv_weight = jax.random.uniform(kw, (1, C, 1, 1), jnp.float32, -bound, bound)
    conv_bias = jax.random.uniform(kb, (1,), jnp.float32, -bound, bound)

    out = jax.block_until_ready(spatial_se_layer(x, conv_weight, conv_bias))
    ref = spatial_se_ref(x, conv_weight, conv_bias)

    assert out.shape == x.shape
    max_err = float(jnp.max(jnp.abs(out - ref)))
    assert jnp.allclose(out, ref, atol=1e-5, rtol=1e-5), f"max_err={max_err}"
    print("KERNEL_OK")
</pallas_src>

<mosaic_0001>
module attributes {stable_mosaic.version = 11 : i64} {
  func.func @_spatial_se_kernel(%arg0: i32, %arg1: i32, %arg2: memref<1x4x256xf32, #tpu.memory_space<vmem>>, %arg3: memref<1x5xf32, #tpu.memory_space<vmem>>, %arg4: memref<1x4x256xf32, #tpu.memory_space<vmem>>) attributes {dimension_semantics = [#tpu.dimension_semantics<parallel>, #tpu.dimension_semantics<parallel>], iteration_bounds = array<i64: 2, 1>, scalar_prefetch = 0 : i64, scratch_operands = 0 : i64, tpu.core_type = #tpu.core_type<tc>, window_params = [{transform_indices = @transform_0, window_bounds = array<i64: 1, 4, 256>}, {pipeline_mode = #tpu.pipeline_mode<synchronous>, transform_indices = @transform_1, window_bounds = array<i64: 1, 5>}, {transform_indices = @transform_2, window_bounds = array<i64: 1, 4, 256>}]} {
    %c0 = arith.constant 0 : index
    %c0_0 = arith.constant 0 : index
    %c0_1 = arith.constant 0 : index
    %0 = vector.load %arg2[%c0, %c0_0, %c0_1] : memref<1x4x256xf32, #tpu.memory_space<vmem>>, vector<1x4x256xf32>
    %1 = vector.shape_cast %0 : vector<1x4x256xf32> to vector<4x256xf32>
    %c0_2 = arith.constant 0 : index
    %c0_3 = arith.constant 0 : index
    %2 = vector.load %arg3[%c0_2, %c0_3] : memref<1x5xf32, #tpu.memory_space<vmem>>, vector<1x5xf32>
    %3 = vector.extract_strided_slice %2 {offsets = [0, 0], sizes = [1, 4], strides = [1, 1]} : vector<1x5xf32> to vector<1x4xf32>
    %4 = vector.extract_strided_slice %2 {offsets = [0, 4], sizes = [1, 1], strides = [1, 1]} : vector<1x5xf32> to vector<1x1xf32>
    %cst = arith.constant dense<0.000000e+00> : vector<1x256xf32>
    %5 = tpu.matmul %3, %1, %cst {dimension_numbers = #tpu.dot_dimension_numbers<[1], [0], [0], [1], [0, 0, 1, 1], [], []>} : vector<1x4xf32>, vector<4x256xf32>, vector<1x256xf32> -> vector<1x256xf32>
    %6 = vector.broadcast %4 : vector<1x1xf32> to vector<1x256xf32>
    %7 = arith.addf %5, %6 : vector<1x256xf32>
    %8 = arith.negf %7 : vector<1x256xf32>
    %9 = math.exp %8 : vector<1x256xf32>
    %cst_4 = arith.constant 1.000000e+00 : f32
    %10 = vector.broadcast %cst_4 : f32 to vector<1x256xf32>
    %11 = arith.addf %10, %9 : vector<1x256xf32>
    %12 = arith.divf %10, %11 : vector<1x256xf32>
    %13 = vector.broadcast %12 : vector<1x256xf32> to vector<4x256xf32>
    %14 = arith.mulf %1, %13 : vector<4x256xf32>
    %c0_5 = arith.constant 0 : index
    %c0_6 = arith.constant 0 : index
    %c0_7 = arith.constant 0 : index
    %15 = vector.load %arg4[%c0_5, %c0_6, %c0_7] : memref<1x4x256xf32, #tpu.memory_space<vmem>>, vector<1x4x256xf32>
    %16 = vector.shape_cast %15 : vector<1x4x256xf32> to vector<4x256xf32>
    %17 = vector.shape_cast %14 : vector<4x256xf32> to vector<1x4x256xf32>
    tpu.vector_store %arg4[%c0_5, %c0_6, %c0_7], %17 {strides = array<i32>} : memref<1x4x256xf32, #tpu.memory_space<vmem>>, vector<1x4x256xf32>,
    return
  }
  func.func @transform_0(%arg0: i32, %arg1: i32) -> (i32, i32, i32) {
    %c0_i32 = arith.constant 0 : i32
    %c0_i32_0 = arith.constant 0 : i32
    return %arg0, %c0_i32, %arg1 : i32, i32, i32
  }
  func.func @transform_1(%arg0: i32, %arg1: i32) -> (i32, i32) {
    %c0_i32 = arith.constant 0 : i32
    %c0_i32_0 = arith.constant 0 : i32
    %c0_i32_1 = arith.constant 0 : i32
    return %c0_i32, %c0_i32_0 : i32, i32
  }
  func.func @transform_2(%arg0: i32, %arg1: i32) -> (i32, i32, i32) {
    %c0_i32 = arith.constant 0 : i32
    %c0_i32_0 = arith.constant 0 : i32
    return %arg0, %c0_i32, %arg1 : i32, i32, i32
  }
}

</mosaic_0001>

<llo_original>
// kernel: tpu_custom_call.1
$region0: #{tpu_custom_call.1}
  #allocation0 [shape = 'u32[]', space=smem, size = 0x4, offset = 0x4, fixed_abs, tag = 'smem constant byte address 0x4 - core index']
  #allocation1 [shape = 'u32[144,128]{1,0:T(1,128)}', space=vmem, size = 0x12000, scoped, tag = 'internal scratch']
  %s0 = inlined_call_operand.hbm [shape: f32[2,4,256], index: 0, kind: input, shape index: {}]
  %s1 = inlined_call_operand.vmem [shape: f32[1,5], index: 1, kind: input, shape index: {}]
  %s2 = inlined_call_operand.hbm [shape: f32[2,4,256], index: 2, kind: output, shape index: {}]
  %s3 = sld [smem:[#allocation0]]
  $region45: #{tpu_custom_call.1} parent=0
    _
  %s5 = ssub.s32 1, %s3
  %s6 = scalar_select 0, %s5, %s3
  $region1: #{tpu_custom_call.1} parent=0
    #allocation2 [shape = 'u8[8192]{0}', space=vmem, size = 0x2000, scoped, tag = 'input window, operand 0']
    #allocation3 [shape = 's32[2]{0}', space=sflag, size = 0x8, scoped, tag = 'scoped memory for tpu_custom_call.1']
    #allocation4 [shape = 's32[2]{0}', space=sflag, size = 0x8, scoped, tag = 'scoped memory for tpu_custom_call.1']
    #allocation5 [shape = 'u8[8192]{0}', space=vmem, size = 0x2000, scoped, tag = 'output window, operand 0']
    %7 = vsyncpa [#allocation3], 0
    %s8 = scalar_lea.sflag [#allocation3], 1
    %9 = vsyncpa %s8, 0
    %10 = vsyncpa [#allocation4], 0
    %s11 = scalar_lea.sflag [#allocation4], 1
    %12 = vsyncpa %s11, 0
    loop: start=0, step=1, limit=4
    $region2: #{tpu_custom_call.1} parent=1 // loop_pre_header
      _
    $region3: #{tpu_custom_call.1} parent=1 // loop_header
      %s14 = sphi 0, %s18
      %p15 = scmp.ge.s32.totalorder %s14, 4
      %s21 = sphi 0, %s33
      %s22 = sphi 0, %s29
      %s23 = sphi 0, %s21
      %s24 = sphi 0, %s22
      %s25 = sphi 0, %s23
      %s26 = sphi 0, %s24
      %s38 = sphi 0, %s40
      %s41 = sphi 0, %s38
      %s42 = sphi 0, %s41
      %s58 = sphi 0, %s42
      %s62 = sphi 0, %s62
      %s64 = sphi 0, %s62
      %s65 = sphi 0, %s64
      %s79 = sphi 0, %s65
      %s87 = sphi 0, %s89
      %s90 = sphi 0, %s87
      %s91 = sphi 0, %s90
      %s107 = sphi 0, %s91
    $region4: #{tpu_custom_call.1} parent=1 // loop_header_branch
      %17 = sbr.rel (%p15) target = $region8
    $region5: #{tpu_custom_call.1} parent=1 // loop_body
      %s19 = ssub.s32 %s14, 1
      %s20 = ssub.s32 %s14, 2
      %s27 = sadd.s32 1, %s22
      %p28 = scmp.ge.s32.totalorder %s27, 1
      %s29 = scalar_select %p28, 0, %s27
      %s30 = sadd.s32 1, %s21
      %s31 = scalar_select %p28, %s30, %s21
      %p32 = scmp.ge.s32.totalorder %s31, 2
      %s33 = scalar_select %p32, 0, %s31
      %s34 = ssub.s32 %s21, %s33
      %s35 = ssub.s32 %s22, %s29
      %s36 = sor.u32 %s34, %s35
      %p37 = scmp.eq.s32.totalorder %s36, 0
      %s39 = sadd.s32 %s38, 1
      %s40 = scalar_select %p37, %s38, %s39
      %p43 = pneg %p37
      %p44 = scmp.eq.s32.totalorder %s14, 1
      %p45 = por %p43, %p44
      %p46 = scmp.ne.s32.totalorder %s38, %s41
      %p47 = scmp.eq.s32.totalorder %s14, 0
      %p48 = por %p46, %p47
      %p49 = scmp.ne.s32.totalorder %s38, %s41
      %p50 = scmp.eq.s32.totalorder %s19, 1
      %p51 = por %p49, %p50
      %p52 = scmp.ne.s32.totalorder %s41, %s42
      %p53 = scmp.eq.s32.totalorder %s19, 0
      %p54 = por %p52, %p53
      %p55 = scmp.ne.s32.totalorder %s41, %s42
      %p56 = scmp.eq.s32.totalorder %s20, 1
      %p57 = por %p55, %p56
      %p59 = scmp.ne.s32.totalorder %s42, %s58
      %p60 = scmp.eq.s32.totalorder %s20, 0
      %p61 = por %p59, %p60
      %s63 = sadd.s32 %s62, 1
      %p66 = scmp.eq.s32.totalorder %s14, 1
      %p67 = scmp.ne.s32.totalorder %s62, %s64
      %p68 = scmp.eq.s32.totalorder %s14, 0
      %p69 = por %p67, %p68
      %p70 = scmp.ne.s32.totalorder %s62, %s64
      %p71 = scmp.eq.s32.totalorder %s19, 1
      %p72 = por %p70, %p71
      %p73 = scmp.ne.s32.totalorder %s64, %s65
      %p74 = scmp.eq.s32.totalorder %s19, 0
      %p75 = por %p73, %p74
      %p76 = scmp.ne.s32.totalorder %s64, %s65
      %p77 = scmp.eq.s32.totalorder %s20, 1
      %p78 = por %p76, %p77
      %p80 = scmp.ne.s32.totalorder %s65, %s79
      %p81 = scmp.eq.s32.totalorder %s20, 0
      %p82 = por %p80, %p81
      %s83 = ssub.s32 %s21, %s33
      %s84 = ssub.s32 %s22, %s29
      %s85 = sor.u32 %s83, %s84
      %p86 = scmp.eq.s32.totalorder %s85, 0
      %s88 = sadd.s32 %s87, 1
      %s89 = scalar_select %p86, %s87, %s88
      %p92 = pneg %p86
      %p93 = scmp.eq.s32.totalorder %s14, 1
      %p94 = por %p92, %p93
      %p95 = scmp.ne.s32.totalorder %s87, %s90
      %p96 = scmp.eq.s32.totalorder %s14, 0
      %p97 = por %p95, %p96
      %p98 = scmp.ne.s32.totalorder %s87, %s90
      %p99 = scmp.eq.s32.totalorder %s19, 1
      %p100 = por %p98, %p99
      %p101 = scmp.ne.s32.totalorder %s90, %s91
      %p102 = scmp.eq.s32.totalorder %s19, 0
      %p103 = por %p101, %p102
      %p104 = scmp.ne.s32.totalorder %s90, %s91
      %p105 = scmp.eq.s32.totalorder %s20, 1
      %p106 = por %p104, %p105
      %p108 = scmp.ne.s32.totalorder %s91, %s107
      %p109 = scmp.eq.s32.totalorder %s20, 0
      %p110 = por %p108, %p109
      %p111 = scmp.le.s32.totalorder 1, %s14
      %p112 = scmp.lt.s32.totalorder %s14, 3
      %p113 = pnand %p111, %p112
      %p114 = pneg %p113
      // Predicated region
      $region9: #{tpu_custom_call.1} parent=5 // pred_check
        _
      $region10: #{tpu_custom_call.1} parent=5 // pred_check_branch
        %116 = sbr.rel (%p113) target = $region12
      $region11: #{tpu_custom_call.1} parent=5 // pred_region
        %s117 = ssub.s32 %s14, 1
        // Predicated region
        $region13: #{tpu_custom_call.1} parent=11 // pred_check
          %p118 = pneg %p75
        $region14: #{tpu_custom_call.1} parent=11 // pred_check_branch
          %120 = sbr.rel (%p118) target = $region16
        $region15: #{tpu_custom_call.1} parent=11 // pred_region
          _
        $region16: #{tpu_custom_call.1} parent=11 // pred_fallthru
          _
      $region12: #{tpu_custom_call.1} parent=5 // pred_fallthru
        _
      %p121 = scmp.lt.s32.totalorder %s14, 2
      // Predicated region
      $region17: #{tpu_custom_call.1} parent=5 // pred_check
        %p122 = pneg %p121
      $region18: #{tpu_custom_call.1} parent=5 // pred_check_branch
        %124 = sbr.rel (%p122) target = $region20
      $region19: #{tpu_custom_call.1} parent=5 // pred_region
        // Predicated region
        $region21: #{tpu_custom_call.1} parent=19 // pred_check
          %p125 = pneg %p48
        $region22: #{tpu_custom_call.1} parent=19 // pred_check_branch
          %127 = sbr.rel (%p125) target = $region24
        $region23: #{tpu_custom_call.1} parent=19 // pred_region
          %s128 = sand.u32 %s38, 1
          %s129 = scalar_lea.sflag [#allocation3], %s128
          %s130 = sand.u32 %s38, 1
          %s131 = smul.addr %s130, 8
          %s132 = scalar_lea.vmem [#allocation2], %s131
          %s133 = smul.u32 2, %s22
          %s135 = ssub.s32 128, 128
          %136 = vsyncadd %s129, %s135
          %s137 = smul.addr %s21, 2
          %s138 = sadd.s32 %s133, %s137
          %s139 = smul.addr %s138, 64
          %s140 = scalar_lea.hbm %s0, %s139
          %s142 = sshll.u32 %s132, 4
          %s143 = int_to_ptr.vmem [resolvable:$true] %s142
          %145 = dma.hbm_to_vmem [thread:$0]  %s140, 128, %s143, %s129
        $region24: #{tpu_custom_call.1} parent=19 // pred_fallthru
          _
      $region20: #{tpu_custom_call.1} parent=5 // pred_fallthru
        _
      %p146 = scmp.le.s32.totalorder 1, %s14
      %p147 = scmp.lt.s32.totalorder %s14, 3
      %p148 = pnand %p146, %p147
      %p149 = pneg %p148
      // Predicated region
      $region25: #{tpu_custom_call.1} parent=5 // pred_check
        _
      $region26: #{tpu_custom_call.1} parent=5 // pred_check_branch
        %151 = sbr.rel (%p148) target = $region28
      $region27: #{tpu_custom_call.1} parent=5 // pred_region
        %s152 = ssub.s32 %s14, 1
        %s153 = sand.u32 %s41, 1
        %s154 = scalar_lea.sflag [#allocation3], %s153
        %s155 = sand.u32 %s41, 1
        %s156 = smul.addr %s155, 8
        %s157 = scalar_lea.vmem [#allocation2], %s156
        // Predicated region
        $region29: #{tpu_custom_call.1} parent=27 // pred_check
          %p158 = pneg %p54
        $region30: #{tpu_custom_call.1} parent=27 // pred_check_branch
          %160 = sbr.rel (%p158) target = $region32
        $region31: #{tpu_custom_call.1} parent=27 // pred_region
          %161 = dma.done %s154, 128
        $region32: #{tpu_custom_call.1} parent=27 // pred_fallthru
          _
        %s162 = sand.u32 %s41, 1
        %s163 = scalar_lea.sflag [#allocation3], %s162
        %s164 = sand.u32 %s41, 1
        %s165 = smul.addr %s164, 8
        %s166 = scalar_lea.vmem [#allocation2], %s165
        %p167 = pneg %p54
        %p168 = pneg %p51
        %p169 = pneg %p75
        %p170 = pneg %p72
        %p171 = pneg %p103
        %p172 = pneg %p100
        %s173 = sand.u32 %s90, 1
        %s174 = scalar_lea.sflag [#allocation4], %s173
        %s175 = sand.u32 %s90, 1
        %s176 = smul.addr %s175, 8
        %s177 = scalar_lea.vmem [#allocation5], %s176
        %s178 = smul.u32 2, %s24
        %s179 = smul.u32 2, %s24
        %v180 = vld [vmem:[%s157] sm:$0xff]
        %v181 = vld [vmem:[%s1] sm:$0x1]
        %183 = vset.pattern.permute.xlu0 4
        %184 = vperm.xlu0 %183, %v181
        %v185 = vpop.permute.xlu0 %184
        %v187 = vlaneseq
        %v188 = vshrl.u32 %v187, 7
        %v189 = vsub.s32 0, %v188
        %v190 = vrot.slane %v185, %v189
        %v192 = vcombine.high %v180, %v180
        %vm193 = vcmask 31744
        %v194 = vsel %vm193, %v181, 0
        %vm196 = vcmask 1043456
        %v197 = vsel %vm196, %v180, 0
        %v199 = vsel %vm196, %v192, 0
        %201 = vmatprep.subr.mxu0 %v199
        %202 = vmatpush1.msra.mxu0 %v197
        %203 = vmatprep.subr.mxu0 0.0
        %204 = vmatpush1.msra.mxu0 0.0
        %205 = vmatprep.subr.mxu0 0.0
        %206 = vmatpush1.msra.mxu0 0.0
        %207 = vmatprep.subr.mxu0 0.0
        %208 = vmatpush1.msra.mxu0 0.0
        %209 = vmatprep.subr.mxu0 0.0
        %210 = vmatpush1.msra.mxu0 0.0
        %211 = vmatprep.subr.mxu0 0.0
        %212 = vmatpush1.msra.mxu0 0.0
        %213 = vmatprep.subr.mxu0 0.0
        %214 = vmatpush1.msra.mxu0 0.0
        %215 = vmatprep.subr.mxu0 0.0
        %216 = vmatpush1.msra.mxu0 0.0
        %217 = vmatprep.subr.mxu0 0.0
        %218 = vmatpush1.msra.mxu0 0.0
        %219 = vmatprep.subr.mxu0 0.0
        %220 = vmatpush1.msra.mxu0 0.0
        %221 = vmatprep.subr.mxu0 0.0
        %222 = vmatpush1.msra.mxu0 0.0
        %223 = vmatprep.subr.mxu0 0.0
        %224 = vmatpush1.msra.mxu0 0.0
        %225 = vmatprep.subr.mxu0 0.0
        %226 = vmatpush1.msra.mxu0 0.0
        %227 = vmatprep.subr.mxu0 0.0
        %228 = vmatpush1.msra.mxu0 0.0
        %229 = vmatprep.subr.mxu0 0.0
        %230 = vmatpush1.msra.mxu0 0.0
        %231 = vmatprep.subr.mxu0 0.0
        %232 = vmatpush1.msra.mxu0 0.0
        %233 = vmatprep.subr.mxu0 0.0
        %234 = vmatpush1.msra.mxu0 0.0
        %235 = vmatprep.subr.mxu0 0.0
        %236 = vmatpush1.msra.mxu0 0.0
        %237 = vmatprep.subr.mxu0 0.0
        %238 = vmatpush1.msra.mxu0 0.0
        %239 = vmatprep.subr.mxu0 0.0
        %240 = vmatpush1.msra.mxu0 0.0
        %241 = vmatprep.subr.mxu0 0.0
        %242 = vmatpush1.msra.mxu0 0.0
        %243 = vmatprep.subr.mxu0 0.0
        %244 = vmatpush1.msra.mxu0 0.0
        %245 = vmatprep.subr.mxu0 0.0
        %246 = vmatpush1.msra.mxu0 0.0
        %247 = vmatprep.subr.mxu0 0.0
        %248 = vmatpush1.msra.mxu0 0.0
        %249 = vmatprep.subr.mxu0 0.0
        %250 = vmatpush1.msra.mxu0 0.0
        %251 = vmatprep.subr.mxu0 0.0
        %252 = vmatpush1.msra.mxu0 0.0
        %253 = vmatprep.subr.mxu0 0.0
        %254 = vmatpush1.msra.mxu0 0.0
        %255 = vmatprep.subr.mxu0 0.0
        %256 = vmatpush1.msra.mxu0 0.0
        %257 = vmatprep.subr.mxu0 0.0
        %258 = vmatpush1.msra.mxu0 0.0
        %259 = vmatprep.subr.mxu0 0.0
        %260 = vmatpush1.msra.mxu0 0.0
        %261 = vmatprep.subr.mxu0 0.0
        %262 = vmatpush1.msra.mxu0 0.0
        %263 = vmatprep.subr.mxu0 0.0
        %264 = vmatpush1.msra.mxu0 0.0
        %265 = vmatprep.mubr.f32.mxu0 0.0
        %266 = vmatmul.mubr.f32.gmra.mrb[0].mxu0 %v194
        %v267 = vpop.f32.mrb[0].mxu0
        %v268 = vadd.f32 %v190, %v267
        %v269 = vpop.f32.mrb[0].mxu0
        %v270 = vadd.f32 %v190, %v269
        %271 = vdwg.mxu0
        %v272 = vxor.u32 %v268, 2147483648
        %v273 = vxor.u32 %v270, 2147483648
        %v274 = vmul.f32 %v272, 1.442695
        %v275 = vpow.pop %v274
        %v276 = vmul.f32 %v273, 1.442695
        %v277 = vpow.pop %v276
        %v278 = vadd.f32 %v275, 1.0
        %v279 = vadd.f32 %v277, 1.0
        %v280 = vrcp.pop %v278
        %v281 = vmul.f32 1.0, %v280
        %v282 = vrcp.pop %v279
        %v283 = vmul.f32 1.0, %v282
        %v284 = vlaneseq
        %v285 = vshrl.u32 %v284, 7
        %v286 = vsub.s32 0, %v285
        %v287 = vrot.slane %v281, %v286
        %v288 = vlaneseq
        %v289 = vshrl.u32 %v288, 7
        %v290 = vsub.s32 0, %v289
        %v291 = vrot.slane %v283, %v290
        %v294 = vcombine.low %v287, %v291
        %v296 = vmul.f32 %v180, %v294
        %297 = vst [vmem:[%s177] sm:$0xff] %v296
        %s298 = sand.u32 %s90, 1
        %s299 = scalar_lea.sflag [#allocation4], %s298
        %s300 = sand.u32 %s90, 1
        %s301 = smul.addr %s300, 8
        %s302 = scalar_lea.vmem [#allocation5], %s301
        // Predicated region
        $region33: #{tpu_custom_call.1} parent=27 // pred_check
          %p303 = pneg %p100
        $region34: #{tpu_custom_call.1} parent=27 // pred_check_branch
          %305 = sbr.rel (%p303) target = $region36
        $region35: #{tpu_custom_call.1} parent=27 // pred_region
          %s306 = smul.u32 2, %s24
          %s308 = ssub.s32 128, 128
          %309 = vsyncadd %s299, %s308
          %s310 = smul.addr %s23, 2
          %s311 = sadd.s32 %s306, %s310
          %s312 = smul.addr %s311, 64
          %s313 = scalar_lea.hbm %s2, %s312
          %s315 = sshll.u32 %s302, 4
          %s316 = int_to_ptr.vmem [resolvable:$true] %s315
          %318 = dma.vmem_to_hbm [thread:$0]  %s316, 128, %s313, %s299
        $region36: #{tpu_custom_call.1} parent=27 // pred_fallthru
          _
      $region28: #{tpu_custom_call.1} parent=5 // pred_fallthru
        _
      %p319 = scmp.le.s32.totalorder 2, %s14
      // Predicated region
      $region37: #{tpu_custom_call.1} parent=5 // pred_check
        %p320 = pneg %p319
      $region38: #{tpu_custom_call.1} parent=5 // pred_check_branch
        %322 = sbr.rel (%p320) target = $region40
      $region39: #{tpu_custom_call.1} parent=5 // pred_region
        %s323 = ssub.s32 %s14, 2
        // Predicated region
        $region41: #{tpu_custom_call.1} parent=39 // pred_check
          %p324 = pneg %p106
        $region42: #{tpu_custom_call.1} parent=39 // pred_check_branch
          %326 = sbr.rel (%p324) target = $region44
        $region43: #{tpu_custom_call.1} parent=39 // pred_region
          %s327 = sand.u32 %s91, 1
          %s328 = scalar_lea.sflag [#allocation4], %s327
          %s329 = sand.u32 %s91, 1
          %s330 = smul.addr %s329, 8
          %s331 = scalar_lea.vmem [#allocation5], %s330
          %332 = dma.done %s328, 128
        $region44: #{tpu_custom_call.1} parent=39 // pred_fallthru
          _
      $region40: #{tpu_custom_call.1} parent=5 // pred_fallthru
        _
    $region6: #{tpu_custom_call.1} parent=1 // loop_footer
      %s18 = sadd.s32 1, %s14
    $region7: #{tpu_custom_call.1} parent=1 // loop_footer_branch
      %13 = sbr.rel target = $region3
    $region8: #{tpu_custom_call.1} parent=1 // loop_exit
      _
    %333 = vsyncpa [#allocation3], 1
    %s334 = scalar_lea.sflag [#allocation3], 1
    %335 = vsyncpa %s334, 1
    %336 = vsyncpa [#allocation4], 1
    %s337 = scalar_lea.sflag [#allocation4], 1
    %338 = vsyncpa %s337, 1

</llo_original>
